<compile_context>
chip_gen: v7x
topology: tpu7x:2x2x1
jax: 0.10.0
libtpu: 0.0.40
codegen_flags: <defaults>
</compile_context>

<pallas_src>
import jax
import jax.numpy as jnp
import numpy as np
from jax.experimental import pallas as pl
from jax.experimental.pallas import tpu as pltpu

BN_EPS = 1e-5


# ----------------------------------------------------------------------------- kernel
def motion_encoder_kernel(z_ref, w1_ref, w2_ref, b2_ref, out_ref):
    """Fused classifier head.

    z_ref  : (B, C + 1 + n_meta + 1)  = [x_mean | med | meta | 1]
    w1_ref : (C + 1 + n_meta + 1, H)  = FC1 with backbone + bias + BN folded in
    w2_ref : (H, num_classes)
    b2_ref : (1, num_classes)
    """
    # FC1 (backbone, concat-features, bias and inference-BN all folded into w1)  -- MXU
    h = jnp.dot(z_ref[...], w1_ref[...], preferred_element_type=jnp.float32)
    # ReLU                                                                        -- VPU
    h = jnp.maximum(h, 0.0)
    # FC2 (final classifier layer)                                                -- MXU
    out_ref[...] = jnp.dot(h, w2_ref[...], preferred_element_type=jnp.float32) + b2_ref[...]


# ----------------------------------------------------------------------------- host-side folding
def fold_params(weights, dim_rep):
    """One-time algebraic fold (outside the kernel, outside the hot path).

    z = [x_mean | med | meta | 1]
    FC1(concat([x_mean @ wb + bb, med, meta])) then BN(inference) then ReLU
      == ReLU( z @ W1_fold )          with
    W1_fold = [ (wb @ w1[:D]) * s ; w1[D:] * s ; ((b1 + bb @ w1[:D]) * s + t) ]
    where s = gamma / sqrt(var + eps), t = beta - mean * s.
    """
    (wb, bb, w1, b1, bn_g, bn_b, bn_m, bn_v, w2, b2) = weights
    w1_feat = w1[:dim_rep]                      # (D, H)   acts on backbone features
    w1_aux = w1[dim_rep:]                       # (1 + n_meta, H)  acts on med/metadata
    scale = bn_g / jnp.sqrt(bn_v + BN_EPS)      # (H,)
    shift = bn_b - bn_m * scale                 # (H,)
    wx = (wb @ w1_feat) * scale                 # (C, H)  backbone folded into FC1
    waux = w1_aux * scale                       # (1 + n_meta, H)
    bias = (b1 + bb @ w1_feat) * scale + shift  # (H,)    bb + b1 + BN shift
    w1_fold = jnp.concatenate([wx, waux, bias[None, :]], axis=0)   # (C+1+n_meta+1, H)
    return w1_fold, w2, b2.reshape(1, -1)


# ----------------------------------------------------------------------------- forward wrapper
def motion_encoder_forward(x, med, metadata, folded):
    """x: (B, T, J, C), med: (B,), metadata: (B, n_meta) -> logits (B, num_classes)."""
    w1_fold, w2, b2 = folded
    B, T, J, C = x.shape
    num_classes = w2.shape[-1]

    # mean over frames and joints commutes with the linear backbone -> pool BEFORE projecting.
    x_mean = x.reshape(B, T * J, C).mean(axis=1)                    # (B, C)
    z = jnp.concatenate(
        [x_mean,
         med.reshape(B, 1).astype(jnp.float32),
         metadata.astype(jnp.float32),
         jnp.ones((B, 1), jnp.float32)],                            # bias column
        axis=-1)                                                    # (B, C+1+n_meta+1)

    return pl.pallas_call(
        motion_encoder_kernel,
        out_shape=jax.ShapeDtypeStruct((B, num_classes), jnp.float32),
        # Tiny, latency-bound problem: every operand is a single full block resident in VMEM.
        in_specs=[pl.BlockSpec(memory_space=pltpu.MemorySpace.VMEM)] * 4,
        out_specs=pl.BlockSpec(memory_space=pltpu.MemorySpace.VMEM),
    )(z, w1_fold, w2, b2)


# ----------------------------------------------------------------------------- reference (unfused)
def reference_forward(x, med, metadata, weights):
    """Pure-JAX replica of the PyTorch forward (inference mode), UNfused, for validation."""
    (wb, bb, w1, b1, bn_g, bn_b, bn_m, bn_v, w2, b2) = weights
    B, T, J, C = x.shape
    feat = x @ wb + bb                                               # backbone (B,T,J,D)
    medx = jnp.broadcast_to(med.reshape(B, 1, 1, 1), (B, T, J, 1))
    metax = jnp.broadcast_to(metadata.reshape(B, 1, 1, -1), (B, T, J, metadata.shape[-1]))
    feat = jnp.concatenate([feat, medx, metax], axis=-1)             # (B,T,J,D+1+n_meta)
    feat = feat.transpose(0, 2, 3, 1).mean(-1)                       # mean over T -> (B,J,Dt)
    feat = feat.mean(-2)                                             # merge_joints -> (B,Dt)
    h = feat @ w1 + b1
    h = (h - bn_m) / jnp.sqrt(bn_v + BN_EPS) * bn_g + bn_b           # BatchNorm1d (running stats)
    h = jnp.maximum(h, 0.0)
    return h @ w2 + b2


# ----------------------------------------------------------------------------- init
def init_weights(key, c_in=3, dim_rep=16, n_meta=2, hidden=32, num_classes=4):
    ks = jax.random.split(key, 10)
    u = lambda k, shape, fan: jax.random.uniform(
        k, shape, jnp.float32, -1.0 / np.sqrt(fan), 1.0 / np.sqrt(fan))
    input_dim = dim_rep + 1 + n_meta                                 # merge_joints=True
    wb = u(ks[0], (c_in, dim_rep), c_in)                             # synthetic linear backbone
    bb = u(ks[1], (dim_rep,), c_in)
    w1 = u(ks[2], (input_dim, hidden), input_dim)
    b1 = u(ks[3], (hidden,), input_dim)
    bn_g = jax.random.uniform(ks[4], (hidden,), jnp.float32, 0.5, 1.5)
    bn_b = 0.1 * jax.random.normal(ks[5], (hidden,), jnp.float32)
    bn_m = 0.1 * jax.random.normal(ks[6], (hidden,), jnp.float32)
    bn_v = jax.random.uniform(ks[7], (hidden,), jnp.float32, 0.8, 1.2)
    w2 = u(ks[8], (hidden, num_classes), hidden)
    b2 = u(ks[9], (num_classes,), hidden)
    return (wb, bb, w1, b1, bn_g, bn_b, bn_m, bn_v, w2, b2)


if __name__ == "__main__":
    B, T, J, C = 2, 8, 17, 3          # (batch, frames, joints, xyz)
    n_meta, dim_rep, hidden, num_classes = 2, 16, 32, 4

    key = jax.random.PRNGKey(0)
    k_x, k_med, k_meta, k_w = jax.random.split(key, 4)
    x = jax.random.normal(k_x, (B, T, J, C), jnp.float32)
    med = jax.random.bernoulli(k_med, 0.5, (B,)).astype(jnp.float32)
    metadata = jax.random.normal(k_meta, (B, n_meta), jnp.float32)
    weights = init_weights(k_w, C, dim_rep, n_meta, hidden, num_classes)

    folded = fold_params(weights, dim_rep)        # one-time host-side fold
    out = motion_encoder_forward(x, med, metadata, folded)
    out = jax.block_until_ready(out)

    ref = jax.block_until_ready(reference_forward(x, med, metadata, weights))
    np.testing.assert_allclose(np.asarray(out), np.asarray(ref), rtol=1e-4, atol=1e-5)

    assert out.shape == (B, num_classes)
    print("KERNEL_OK")
</pallas_src>

<mosaic_0001>
module attributes {stable_mosaic.version = 11 : i64} {
  func.func @motion_encoder_kernel(%arg0: memref<2x7xf32, #tpu.memory_space<vmem>>, %arg1: memref<7x32xf32, #tpu.memory_space<vmem>>, %arg2: memref<32x4xf32, #tpu.memory_space<vmem>>, %arg3: memref<1x4xf32, #tpu.memory_space<vmem>>, %arg4: memref<2x4xf32, #tpu.memory_space<vmem>>) attributes {dimension_semantics = [], scalar_prefetch = 0 : i64, scratch_operands = 0 : i64, tpu.core_type = #tpu.core_type<tc>} {
    %c0 = arith.constant 0 : index
    %c0_0 = arith.constant 0 : index
    %0 = vector.load %arg0[%c0, %c0_0] : memref<2x7xf32, #tpu.memory_space<vmem>>, vector<2x7xf32>
    %c0_1 = arith.constant 0 : index
    %c0_2 = arith.constant 0 : index
    %1 = vector.load %arg1[%c0_1, %c0_2] : memref<7x32xf32, #tpu.memory_space<vmem>>, vector<7x32xf32>
    %cst = arith.constant dense<0.000000e+00> : vector<2x32xf32>
    %2 = tpu.matmul %0, %1, %cst {dimension_numbers = #tpu.dot_dimension_numbers<[1], [0], [0], [1], [0, 0, 1, 1], [], []>} : vector<2x7xf32>, vector<7x32xf32>, vector<2x32xf32> -> vector<2x32xf32>
    %cst_3 = arith.constant 0.000000e+00 : f32
    %3 = vector.broadcast %cst_3 : f32 to vector<2x32xf32>
    %4 = arith.maximumf %2, %3 : vector<2x32xf32>
    %c0_4 = arith.constant 0 : index
    %c0_5 = arith.constant 0 : index
    %5 = vector.load %arg2[%c0_4, %c0_5] : memref<32x4xf32, #tpu.memory_space<vmem>>, vector<32x4xf32>
    %cst_6 = arith.constant dense<0.000000e+00> : vector<2x4xf32>
    %6 = tpu.matmul %4, %5, %cst_6 {dimension_numbers = #tpu.dot_dimension_numbers<[1], [0], [0], [1], [0, 0, 1, 1], [], []>} : vector<2x32xf32>, vector<32x4xf32>, vector<2x4xf32> -> vector<2x4xf32>
    %c0_7 = arith.constant 0 : index
    %c0_8 = arith.constant 0 : index
    %7 = vector.load %arg3[%c0_7, %c0_8] : memref<1x4xf32, #tpu.memory_space<vmem>>, vector<1x4xf32>
    %8 = vector.broadcast %7 : vector<1x4xf32> to vector<2x4xf32>
    %9 = arith.addf %6, %8 : vector<2x4xf32>
    %c0_9 = arith.constant 0 : index
    %c0_10 = arith.constant 0 : index
    %10 = vector.load %arg4[%c0_9, %c0_10] : memref<2x4xf32, #tpu.memory_space<vmem>>, vector<2x4xf32>
    tpu.vector_store %arg4[%c0_9, %c0_10], %9 {strides = array<i32>} : memref<2x4xf32, #tpu.memory_space<vmem>>, vector<2x4xf32>,
    return
  }
}

</mosaic_0001>

<llo_original>
// kernel: tpu_custom_call.1
$region0: #{tpu_custom_call.1}
  #allocation0 [shape = 'u32[]', space=smem, size = 0x4, offset = 0x4, fixed_abs, tag = 'smem constant byte address 0x4 - core index']
  #allocation1 [shape = 'u32[144,128]{1,0:T(1,128)}', space=vmem, size = 0x12000, scoped, tag = 'internal scratch']
  %s0 = inlined_call_operand.vmem [shape: f32[2,7], index: 0, kind: input, shape index: {}]
  %s1 = inlined_call_operand.vmem [shape: f32[7,32], index: 1, kind: input, shape index: {}]
  %s2 = inlined_call_operand.vmem [shape: f32[32,4], index: 2, kind: input, shape index: {}]
  %s3 = inlined_call_operand.vmem [shape: f32[1,4], index: 3, kind: input, shape index: {}]
  %s4 = inlined_call_operand.hbm [shape: f32[2,4], index: 4, kind: output, shape index: {}]
  %s5 = sld [smem:[#allocation0]]
  $region26: #{tpu_custom_call.1} parent=0
    _
  %s7 = ssub.s32 1, %s5
  %s8 = scalar_select 0, %s7, %s5
  $region1: #{tpu_custom_call.1} parent=0
    #allocation2 [shape = 'u8[1024]{0}', space=vmem, size = 0x400, scoped, tag = 'output window, operand 0, single buffered']
    #allocation3 [shape = 's32[1]{0}', space=sflag, size = 0x4, scoped, tag = 'scoped memory for tpu_custom_call.1']
    %9 = vsyncpa [#allocation3], 0
    // Predicated region
    $region2: #{tpu_custom_call.1} parent=1 // pred_check
      _
    $region3: #{tpu_custom_call.1} parent=1 // pred_check_branch
      %11 = sbr.rel (0) target = $region5
    $region4: #{tpu_custom_call.1} parent=1 // pred_region
      _
    $region5: #{tpu_custom_call.1} parent=1 // pred_fallthru
      _
    // Predicated region
    $region6: #{tpu_custom_call.1} parent=1 // pred_check
      _
    $region7: #{tpu_custom_call.1} parent=1 // pred_check_branch
      %13 = sbr.rel (0) target = $region9
    $region8: #{tpu_custom_call.1} parent=1 // pred_region
      _
    $region9: #{tpu_custom_call.1} parent=1 // pred_fallthru
      _
    // Predicated region
    $region10: #{tpu_custom_call.1} parent=1 // pred_check
      _
    $region11: #{tpu_custom_call.1} parent=1 // pred_check_branch
      %15 = sbr.rel (0) target = $region13
    $region12: #{tpu_custom_call.1} parent=1 // pred_region
      _
    $region13: #{tpu_custom_call.1} parent=1 // pred_fallthru
      _
    // Predicated region
    $region14: #{tpu_custom_call.1} parent=1 // pred_check
      _
    $region15: #{tpu_custom_call.1} parent=1 // pred_check_branch
      %17 = sbr.rel (0) target = $region17
    $region16: #{tpu_custom_call.1} parent=1 // pred_region
      _
    $region17: #{tpu_custom_call.1} parent=1 // pred_fallthru
      _
    %v18 = vld [vmem:[%s0] sm:$0x3]
    %v19 = vld [vmem:[%s1] sm:$0x7f]
    %vm20 = vcmask 56320
    %v22 = vsel %vm20, %v18, 0
    %vm24 = vcmask 1046528
    %v26 = vsel %vm24, %v19, 0
    %28 = vmatprep.subr.mxu0 0.0
    %29 = vmatpush1.msra.mxu0 %v26
    %30 = vmatprep.subr.mxu0 0.0
    %31 = vmatpush1.msra.mxu0 0.0
    %32 = vmatprep.subr.mxu0 0.0
    %33 = vmatpush1.msra.mxu0 0.0
    %34 = vmatprep.subr.mxu0 0.0
    %35 = vmatpush1.msra.mxu0 0.0
    %36 = vmatprep.subr.mxu0 0.0
    %37 = vmatpush1.msra.mxu0 0.0
    %38 = vmatprep.subr.mxu0 0.0
    %39 = vmatpush1.msra.mxu0 0.0
    %40 = vmatprep.subr.mxu0 0.0
    %41 = vmatpush1.msra.mxu0 0.0
    %42 = vmatprep.subr.mxu0 0.0
    %43 = vmatpush1.msra.mxu0 0.0
    %44 = vmatprep.subr.mxu0 0.0
    %45 = vmatpush1.msra.mxu0 0.0
    %46 = vmatprep.subr.mxu0 0.0
    %47 = vmatpush1.msra.mxu0 0.0
    %48 = vmatprep.subr.mxu0 0.0
    %49 = vmatpush1.msra.mxu0 0.0
    %50 = vmatprep.subr.mxu0 0.0
    %51 = vmatpush1.msra.mxu0 0.0
    %52 = vmatprep.subr.mxu0 0.0
    %53 = vmatpush1.msra.mxu0 0.0
    %54 = vmatprep.subr.mxu0 0.0
    %55 = vmatpush1.msra.mxu0 0.0
    %56 = vmatprep.subr.mxu0 0.0
    %57 = vmatpush1.msra.mxu0 0.0
    %58 = vmatprep.subr.mxu0 0.0
    %59 = vmatpush1.msra.mxu0 0.0
    %60 = vmatprep.subr.mxu0 0.0
    %61 = vmatpush1.msra.mxu0 0.0
    %62 = vmatprep.subr.mxu0 0.0
    %63 = vmatpush1.msra.mxu0 0.0
    %64 = vmatprep.subr.mxu0 0.0
    %65 = vmatpush1.msra.mxu0 0.0
    %66 = vmatprep.subr.mxu0 0.0
    %67 = vmatpush1.msra.mxu0 0.0
    %68 = vmatprep.subr.mxu0 0.0
    %69 = vmatpush1.msra.mxu0 0.0
    %70 = vmatprep.subr.mxu0 0.0
    %71 = vmatpush1.msra.mxu0 0.0
    %72 = vmatprep.subr.mxu0 0.0
    %73 = vmatpush1.msra.mxu0 0.0
    %74 = vmatprep.subr.mxu0 0.0
    %75 = vmatpush1.msra.mxu0 0.0
    %76 = vmatprep.subr.mxu0 0.0
    %77 = vmatpush1.msra.mxu0 0.0
    %78 = vmatprep.subr.mxu0 0.0
    %79 = vmatpush1.msra.mxu0 0.0
    %80 = vmatprep.subr.mxu0 0.0
    %81 = vmatpush1.msra.mxu0 0.0
    %82 = vmatprep.subr.mxu0 0.0
    %83 = vmatpush1.msra.mxu0 0.0
    %84 = vmatprep.subr.mxu0 0.0
    %85 = vmatpush1.msra.mxu0 0.0
    %86 = vmatprep.subr.mxu0 0.0
    %87 = vmatpush1.msra.mxu0 0.0
    %88 = vmatprep.subr.mxu0 0.0
    %89 = vmatpush1.msra.mxu0 0.0
    %90 = vmatprep.subr.mxu0 0.0
    %91 = vmatpush1.msra.mxu0 0.0
    %92 = vmatprep.mubr.f32.mxu0 0.0
    %93 = vmatmul.mubr.f32.gmra.mrb[0].mxu0 %v22
    %v94 = vpop.f32.mrb[0].mxu0
    %v95 = vadd.f32 0.0, %v94
    %v96 = vpop.f32.mrb[0].mxu0
    %97 = vdwg.mxu0
    %v98 = vmax.f32 %v95, 0.0
    %v99 = vld [vmem:[%s2] sm:$0xff]
    %v100 = vld [vmem:[%s2 + $0x8] sm:$0xff]
    %v101 = vld [vmem:[%s2 + $0x10] sm:$0xff]
    %v102 = vld [vmem:[%s2 + $0x18] sm:$0xff]
    %v103 = vld [vmem:[%s3] sm:$0x1]
    %v105 = vlaneseq
    %v106 = vshrl.u32 %v105, 7
    %v107 = vsub.s32 0, %v106
    %v108 = vrot.slane %v103, %v107
    %vm110 = vcmask 261120
    %v112 = vsel %vm110, %v98, 0
    %114 = vmatprep.subr.mxu0 0.0
    %115 = vmatpush1.msra.mxu0 %v99
    %116 = vmatprep.subr.mxu0 0.0
    %117 = vmatpush1.msra.mxu0 %v100
    %118 = vmatprep.subr.mxu0 0.0
    %119 = vmatpush1.msra.mxu0 %v101
    %120 = vmatprep.subr.mxu0 0.0
    %121 = vmatpush1.msra.mxu0 %v102
    %122 = vmatprep.subr.mxu0 0.0
    %123 = vmatpush1.msra.mxu0 0.0
    %124 = vmatprep.subr.mxu0 0.0
    %125 = vmatpush1.msra.mxu0 0.0
    %126 = vmatprep.subr.mxu0 0.0
    %127 = vmatpush1.msra.mxu0 0.0
    %128 = vmatprep.subr.mxu0 0.0
    %129 = vmatpush1.msra.mxu0 0.0
    %130 = vmatprep.subr.mxu0 0.0
    %131 = vmatpush1.msra.mxu0 0.0
    %132 = vmatprep.subr.mxu0 0.0
    %133 = vmatpush1.msra.mxu0 0.0
    %134 = vmatprep.subr.mxu0 0.0
    %135 = vmatpush1.msra.mxu0 0.0
    %136 = vmatprep.subr.mxu0 0.0
    %137 = vmatpush1.msra.mxu0 0.0
    %138 = vmatprep.subr.mxu0 0.0
    %139 = vmatpush1.msra.mxu0 0.0
    %140 = vmatprep.subr.mxu0 0.0
    %141 = vmatpush1.msra.mxu0 0.0
    %142 = vmatprep.subr.mxu0 0.0
    %143 = vmatpush1.msra.mxu0 0.0
    %144 = vmatprep.subr.mxu0 0.0
    %145 = vmatpush1.msra.mxu0 0.0
    %146 = vmatprep.subr.mxu0 0.0
    %147 = vmatpush1.msra.mxu0 0.0
    %148 = vmatprep.subr.mxu0 0.0
    %149 = vmatpush1.msra.mxu0 0.0
    %150 = vmatprep.subr.mxu0 0.0
    %151 = vmatpush1.msra.mxu0 0.0
    %152 = vmatprep.subr.mxu0 0.0
    %153 = vmatpush1.msra.mxu0 0.0
    %154 = vmatprep.subr.mxu0 0.0
    %155 = vmatpush1.msra.mxu0 0.0
    %156 = vmatprep.subr.mxu0 0.0
    %157 = vmatpush1.msra.mxu0 0.0
    %158 = vmatprep.subr.mxu0 0.0
    %159 = vmatpush1.msra.mxu0 0.0
    %160 = vmatprep.subr.mxu0 0.0
    %161 = vmatpush1.msra.mxu0 0.0
    %162 = vmatprep.subr.mxu0 0.0
    %163 = vmatpush1.msra.mxu0 0.0
    %164 = vmatprep.subr.mxu0 0.0
    %165 = vmatpush1.msra.mxu0 0.0
    %166 = vmatprep.subr.mxu0 0.0
    %167 = vmatpush1.msra.mxu0 0.0
    %168 = vmatprep.subr.mxu0 0.0
    %169 = vmatpush1.msra.mxu0 0.0
    %170 = vmatprep.subr.mxu0 0.0
    %171 = vmatpush1.msra.mxu0 0.0
    %172 = vmatprep.subr.mxu0 0.0
    %173 = vmatpush1.msra.mxu0 0.0
    %174 = vmatprep.subr.mxu0 0.0
    %175 = vmatpush1.msra.mxu0 0.0
    %176 = vmatprep.subr.mxu0 0.0
    %177 = vmatpush1.msra.mxu0 0.0
    %178 = vmatprep.mubr.f32.mxu0 0.0
    %179 = vmatmul.mubr.f32.gmra.mrb[0].mxu0 %v112
    %v180 = vpop.f32.mrb[0].mxu0
    %v181 = vadd.f32 %v108, %v180
    %v182 = vpop.f32.mrb[0].mxu0
    %183 = vdwg.mxu0
    %vm184 = vcmask 25600
    %185 = vst.msk [vmem:[#allocation2] sm:$0x3] %vm184, %v181
    // Predicated region
    $region18: #{tpu_custom_call.1} parent=1 // pred_check
      _
    $region19: #{tpu_custom_call.1} parent=1 // pred_check_branch
      %187 = sbr.rel (0) target = $region21
    $region20: #{tpu_custom_call.1} parent=1 // pred_region
      %s189 = ssub.s32 32, 32
      %190 = vsyncadd [#allocation3], %s189
      %s192 = sshll.u32 [#allocation2], 4
      %s193 = int_to_ptr.vmem [resolvable:$true] %s192
      %195 = dma.vmem_to_hbm [thread:$0]  %s193, 32, %s4, [#allocation3]
    $region21: #{tpu_custom_call.1} parent=1 // pred_fallthru
      _
    // Predicated region
    $region22: #{tpu_custom_call.1} parent=1 // pred_check
      _
    $region23: #{tpu_custom_call.1} parent=1 // pred_check_branch
      %197 = sbr.rel (0) target = $region25
    $region24: #{tpu_custom_call.1} parent=1 // pred_region
      %198 = dma.done [#allocation3], 32
    $region25: #{tpu_custom_call.1} parent=1 // pred_fallthru
      _
    %199 = vsyncpa [#allocation3], 1

</llo_original>
